<compile_context>
chip_gen: v5e
topology: v5e:2x2
jax: 0.10.0
libtpu: 0.0.40
codegen_flags: <defaults>
</compile_context>

<pallas_src>
import jax
import jax.numpy as jnp
from jax.experimental import pallas as pl
from jax.experimental.pallas import tpu as pltpu


def _chomp2d_kernel(x_ref, o_ref):
    # x_ref: (nct, h_in_blk, w_in_blk) VMEM; o_ref: (nct, h_out_blk, w_out).
    # Static slice; a no-op along any dim the BlockSpec already cropped.
    _, th, tw = o_ref.shape
    o_ref[...] = x_ref[:, :th, :tw]


def _round_up(x: int, m: int) -> int:
    return ((x + m - 1) // m) * m


def _sublane_multiple(dtype) -> int:
    """Second-minor tiling multiple for a dtype (f32: 8, bf16: 16, int8: 32)."""
    return max(8, 32 // jnp.dtype(dtype).itemsize)


def chomp2d(
    x: jax.Array,
    chomp_size: int,
    *,
    block_budget_bytes: int = 8 * 1024 * 1024,   # total double-buffered footprint
    min_grid_steps: int = 8,
) -> jax.Array:
    """Pallas equivalent of Chomp2d(chomp_size).forward(x), x in NCHW."""
    assert chomp_size >= 0
    n, c, h, w = x.shape
    if chomp_size == 0:
        # PyTorch `[:-0]` slices to an empty tensor; match that exactly.
        return x[:, :, :0, :0]

    h_out = h - chomp_size
    w_out = w - 2 * chomp_size
    assert h_out > 0 and w_out > 0, "chomp_size too large for input"

    itemsize = jnp.dtype(x.dtype).itemsize
    sub = _sublane_multiple(x.dtype)

    nc = n * c
    x3 = x.reshape(nc, h, w)  # free on contiguous NCHW

    # ---- W crop / block (last dim: multiple of 128 or full extent) ----
    w_rounded = _round_up(w_out, 128)
    if w_rounded >= w or w_rounded * itemsize < 512:
        # No saving possible, or runs would be too short for efficient strided
        # DMA -> read full contiguous rows and crop W inside the kernel.
        w_in_blk = w
    else:
        w_in_blk = w_rounded  # BlockSpec-level W crop; chomped cols stay in HBM.

    w_in_pad = _round_up(w_in_blk, 128)
    w_out_pad = _round_up(w_out, 128)

    def footprint(h_in_b: int, h_out_b: int) -> int:
        """Double-buffered (in+out) VMEM bytes for one channel, tile-padded."""
        in_b = _round_up(h_in_b, sub) * w_in_pad * itemsize
        out_b = _round_up(h_out_b, sub) * w_out_pad * itemsize
        return 2 * (in_b + out_b)

    # ---- H crop / block (second-minor dim: multiple of sublane or full) ----
    h_single = _round_up(h_out, sub)
    if h_single > h:
        h_single = h  # full-dim fallback; wastes < sub rows of reads

    if footprint(h_single, h_out) <= block_budget_bytes or h_out <= sub:
        # Case A: single H block.  Input over-reads < sub rows at most.
        h_in_blk, h_out_blk, num_h_blocks = h_single, h_out, 1
    else:
        # Case B: tile H so a single channel slab fits the budget.
        th = (h_out // sub) * sub
        while th > sub and footprint(th, th) > block_budget_bytes:
            th -= sub
        h_in_blk = h_out_blk = th
        num_h_blocks = pl.cdiv(h_out, th)

    # ---- channel (N*C) tiling: padded-footprint budget + ragged last block ----
    per_nc = footprint(h_in_blk, h_out_blk)
    nct = max(1, min(nc, block_budget_bytes // max(1, per_nc)))
    # Keep enough grid steps for DMA overlap / both v7x TensorCores.
    while nct > 1 and pl.cdiv(nc, nct) * num_h_blocks < min_grid_steps:
        nct = max(1, nct // 2)
    num_nc_blocks = pl.cdiv(nc, nct)

    in_spec = pl.BlockSpec((nct, h_in_blk, w_in_blk), lambda i, j: (i, j, 0))
    out_spec = pl.BlockSpec((nct, h_out_blk, w_out), lambda i, j: (i, j, 0))

    rows_read = min(h, num_h_blocks * h_in_blk)
    cost = pl.CostEstimate(
        flops=0,
        transcendentals=0,
        bytes_accessed=nc * (rows_read * w_in_blk + h_out * w_out) * itemsize,
    )

    out3 = pl.pallas_call(
        _chomp2d_kernel,
        out_shape=jax.ShapeDtypeStruct((nc, h_out, w_out), x.dtype),
        grid_spec=pl.GridSpec(
            grid=(num_nc_blocks, num_h_blocks),
            in_specs=[in_spec],
            out_specs=out_spec,
        ),
        compiler_params=pltpu.CompilerParams(
            dimension_semantics=("parallel", "parallel"),
            vmem_limit_bytes=32 * 1024 * 1024,
        ),
        cost_estimate=cost,
    )(x3)
    return out3.reshape(n, c, h_out, w_out)


if __name__ == "__main__":
    key = jax.random.PRNGKey(0)

    def check(x, chomp, **kw):
        out = jax.block_until_ready(chomp2d(x, chomp, **kw))
        ref = x[:, :, :-chomp, : -2 * chomp]
        assert out.shape == ref.shape, (out.shape, ref.shape)
        assert out.dtype == x.dtype
        assert jnp.array_equal(out, ref), "value mismatch"

    # 1) Demo shape (narrow W -> full-row reads, crop in-kernel), f32.
    x1 = jax.random.normal(key, (2, 4, 16, 16), dtype=jnp.float32)
    check(x1, 2)

    # 2) H crop done by the BlockSpec (chomped rows never leave HBM).
    x2 = jax.random.normal(key, (2, 4, 24, 32), dtype=jnp.float32)
    check(x2, 8)

    # 3) W crop done by the BlockSpec (w_out = 256 is a lane multiple < W).
    x3 = jax.random.normal(key, (1, 3, 30, 300), dtype=jnp.float32)
    check(x3, 22)

    # 4) bf16 (sublane multiple 16).
    x4 = jax.random.normal(key, (2, 4, 16, 16), dtype=jnp.bfloat16)
    check(x4, 2)

    # 5) Tiny budget forces the H-tiled path + more grid steps (case B).
    check(x2, 8, block_budget_bytes=16 * 1024)

    print("KERNEL_OK")
</pallas_src>

<mosaic_0001>
module attributes {stable_mosaic.version = 11 : i64} {
  func.func @_chomp2d_kernel(%arg0: i32, %arg1: i32, %arg2: memref<1x16x16xf32, #tpu.memory_space<vmem>>, %arg3: memref<1x14x12xf32, #tpu.memory_space<vmem>>) attributes {dimension_semantics = [#tpu.dimension_semantics<parallel>, #tpu.dimension_semantics<parallel>], iteration_bounds = array<i64: 8, 1>, scalar_prefetch = 0 : i64, scratch_operands = 0 : i64, tpu.core_type = #tpu.core_type<tc>, window_params = [{transform_indices = @transform_0, window_bounds = array<i64: 1, 16, 16>}, {transform_indices = @transform_1, window_bounds = array<i64: 1, 14, 12>}]} {
    %c0 = arith.constant 0 : index
    %c0_0 = arith.constant 0 : index
    %c0_1 = arith.constant 0 : index
    %0 = vector.load %arg2[%c0, %c0_0, %c0_1] : memref<1x16x16xf32, #tpu.memory_space<vmem>>, vector<1x14x12xf32>
    %c0_2 = arith.constant 0 : index
    %c0_3 = arith.constant 0 : index
    %c0_4 = arith.constant 0 : index
    %1 = vector.load %arg3[%c0_2, %c0_3, %c0_4] : memref<1x14x12xf32, #tpu.memory_space<vmem>>, vector<1x14x12xf32>
    tpu.vector_store %arg3[%c0_2, %c0_3, %c0_4], %0 {strides = array<i32>} : memref<1x14x12xf32, #tpu.memory_space<vmem>>, vector<1x14x12xf32>,
    return
  }
  func.func @transform_0(%arg0: i32, %arg1: i32) -> (i32, i32, i32) {
    %c0_i32 = arith.constant 0 : i32
    %c0_i32_0 = arith.constant 0 : i32
    return %arg0, %arg1, %c0_i32 : i32, i32, i32
  }
  func.func @transform_1(%arg0: i32, %arg1: i32) -> (i32, i32, i32) {
    %c0_i32 = arith.constant 0 : i32
    %c0_i32_0 = arith.constant 0 : i32
    return %arg0, %arg1, %c0_i32 : i32, i32, i32
  }
}

</mosaic_0001>

<llo_original>
// kernel: tpu_custom_call.1
$region0: #{tpu_custom_call.1}
  #allocation0 [shape = 'u32[]', space=smem, size = 0x4, offset = 0x4, fixed_abs, tag = 'smem constant byte address 0x4 - core index']
  #allocation1 [shape = 'u32[72,128]{1,0:T(1,128)}', space=vmem, size = 0x9000, scoped, tag = 'internal scratch']
  %s0 = inlined_call_operand.hbm [shape: f32[8,16,16], index: 0, kind: input, shape index: {}]
  %s1 = inlined_call_operand.vmem [shape: f32[8,14,12], index: 1, kind: output, shape index: {}]
  %s2 = sld [smem:[#allocation0]]
  $region41: #{tpu_custom_call.1} parent=0
    _
  %s4 = ssub.s32 1, %s2
  %s5 = scalar_select 0, %s4, %s2
  $region1: #{tpu_custom_call.1} parent=0
    #allocation2 [shape = 'u8[16384]{0}', space=vmem, size = 0x4000, scoped, tag = 'input window, operand 0']
    #allocation3 [shape = 's32[2]{0}', space=sflag, size = 0x8, scoped, tag = 'scoped memory for tpu_custom_call.1']
    %6 = vsyncpa [#allocation3], 0
    %s7 = scalar_lea.sflag [#allocation3], 1
    %8 = vsyncpa %s7, 0
    loop: start=0, step=1, limit=10
    $region2: #{tpu_custom_call.1} parent=1 // loop_pre_header
      _
    $region3: #{tpu_custom_call.1} parent=1 // loop_header
      %s10 = sphi 0, %s14
      %p11 = scmp.ge.s32.totalorder %s10, 10
      %s17 = sphi 0, %s29
      %s18 = sphi 0, %s25
      %s19 = sphi 0, %s17
      %s20 = sphi 0, %s18
      %s21 = sphi 0, %s19
      %s22 = sphi 0, %s20
      %s34 = sphi 0, %s36
      %s37 = sphi 0, %s34
      %s38 = sphi 0, %s37
      %s54 = sphi 0, %s38
      %s62 = sphi 0, %s64
      %s65 = sphi 0, %s62
      %s66 = sphi 0, %s65
      %s82 = sphi 0, %s66
    $region4: #{tpu_custom_call.1} parent=1 // loop_header_branch
      %13 = sbr.rel (%p11) target = $region8
    $region5: #{tpu_custom_call.1} parent=1 // loop_body
      %s15 = ssub.s32 %s10, 1
      %s16 = ssub.s32 %s10, 2
      %s23 = sadd.s32 1, %s18
      %p24 = scmp.ge.s32.totalorder %s23, 1
      %s25 = scalar_select %p24, 0, %s23
      %s26 = sadd.s32 1, %s17
      %s27 = scalar_select %p24, %s26, %s17
      %p28 = scmp.ge.s32.totalorder %s27, 8
      %s29 = scalar_select %p28, 0, %s27
      %s30 = ssub.s32 %s17, %s29
      %s31 = ssub.s32 %s18, %s25
      %s32 = sor.u32 %s30, %s31
      %p33 = scmp.eq.s32.totalorder %s32, 0
      %s35 = sadd.s32 %s34, 1
      %s36 = scalar_select %p33, %s34, %s35
      %p39 = pneg %p33
      %p40 = scmp.eq.s32.totalorder %s10, 7
      %p41 = por %p39, %p40
      %p42 = scmp.ne.s32.totalorder %s34, %s37
      %p43 = scmp.eq.s32.totalorder %s10, 0
      %p44 = por %p42, %p43
      %p45 = scmp.ne.s32.totalorder %s34, %s37
      %p46 = scmp.eq.s32.totalorder %s15, 7
      %p47 = por %p45, %p46
      %p48 = scmp.ne.s32.totalorder %s37, %s38
      %p49 = scmp.eq.s32.totalorder %s15, 0
      %p50 = por %p48, %p49
      %p51 = scmp.ne.s32.totalorder %s37, %s38
      %p52 = scmp.eq.s32.totalorder %s16, 7
      %p53 = por %p51, %p52
      %p55 = scmp.ne.s32.totalorder %s38, %s54
      %p56 = scmp.eq.s32.totalorder %s16, 0
      %p57 = por %p55, %p56
      %s58 = ssub.s32 %s17, %s29
      %s59 = ssub.s32 %s18, %s25
      %s60 = sor.u32 %s58, %s59
      %p61 = scmp.eq.s32.totalorder %s60, 0
      %s63 = sadd.s32 %s62, 1
      %s64 = scalar_select %p61, %s62, %s63
      %p67 = pneg %p61
      %p68 = scmp.eq.s32.totalorder %s10, 7
      %p69 = por %p67, %p68
      %p70 = scmp.ne.s32.totalorder %s62, %s65
      %p71 = scmp.eq.s32.totalorder %s10, 0
      %p72 = por %p70, %p71
      %p73 = scmp.ne.s32.totalorder %s62, %s65
      %p74 = scmp.eq.s32.totalorder %s15, 7
      %p75 = por %p73, %p74
      %p76 = scmp.ne.s32.totalorder %s65, %s66
      %p77 = scmp.eq.s32.totalorder %s15, 0
      %p78 = por %p76, %p77
      %p79 = scmp.ne.s32.totalorder %s65, %s66
      %p80 = scmp.eq.s32.totalorder %s16, 7
      %p81 = por %p79, %p80
      %p83 = scmp.ne.s32.totalorder %s66, %s82
      %p84 = scmp.eq.s32.totalorder %s16, 0
      %p85 = por %p83, %p84
      %p86 = scmp.le.s32.totalorder 1, %s10
      %p87 = scmp.lt.s32.totalorder %s10, 9
      %p88 = pnand %p86, %p87
      %p89 = pneg %p88
      // Predicated region
      $region9: #{tpu_custom_call.1} parent=5 // pred_check
        _
      $region10: #{tpu_custom_call.1} parent=5 // pred_check_branch
        %91 = sbr.rel (%p88) target = $region12
      $region11: #{tpu_custom_call.1} parent=5 // pred_region
        %s92 = ssub.s32 %s10, 1
      $region12: #{tpu_custom_call.1} parent=5 // pred_fallthru
        _
      %p93 = scmp.lt.s32.totalorder %s10, 8
      // Predicated region
      $region13: #{tpu_custom_call.1} parent=5 // pred_check
        %p94 = pneg %p93
      $region14: #{tpu_custom_call.1} parent=5 // pred_check_branch
        %96 = sbr.rel (%p94) target = $region16
      $region15: #{tpu_custom_call.1} parent=5 // pred_region
        // Predicated region
        $region17: #{tpu_custom_call.1} parent=15 // pred_check
          %p97 = pneg %p44
        $region18: #{tpu_custom_call.1} parent=15 // pred_check_branch
          %99 = sbr.rel (%p97) target = $region20
        $region19: #{tpu_custom_call.1} parent=15 // pred_region
          %s100 = sand.u32 %s34, 1
          %s101 = scalar_lea.sflag [#allocation3], %s100
          %s102 = sand.u32 %s34, 1
          %s103 = smul.addr %s102, 16
          %s104 = scalar_lea.vmem [#allocation2], %s103
          %s105 = smul.u32 2, %s18
          %107 = vsyncadd %s101, 0
          %s108 = smul.addr %s17, 2
          %s109 = sadd.s32 %s105, %s108
          %s110 = smul.addr %s109, 8
          %s111 = scalar_lea.hbm %s0, %s110
          %s112 = sshll.u32 %s111, 4
          %s113 = int_to_ptr.hbm [resolvable:$true] %s112
          %s114 = sshll.u32 %s104, 4
          %s115 = int_to_ptr.vmem [resolvable:$true] %s114
          %120 = dma.hbm_to_vmem [thread:$0]  %s113, 256, %s115, %s101, 128, 128, 8
        $region20: #{tpu_custom_call.1} parent=15 // pred_fallthru
          _
      $region16: #{tpu_custom_call.1} parent=5 // pred_fallthru
        _
      %p121 = scmp.le.s32.totalorder 1, %s10
      %p122 = scmp.lt.s32.totalorder %s10, 9
      %p123 = pnand %p121, %p122
      %p124 = pneg %p123
      // Predicated region
      $region21: #{tpu_custom_call.1} parent=5 // pred_check
        _
      $region22: #{tpu_custom_call.1} parent=5 // pred_check_branch
        %126 = sbr.rel (%p123) target = $region24
      $region23: #{tpu_custom_call.1} parent=5 // pred_region
        %s127 = ssub.s32 %s10, 1
        %s128 = sand.u32 %s37, 1
        %s129 = scalar_lea.sflag [#allocation3], %s128
        %s130 = sand.u32 %s37, 1
        %s131 = smul.addr %s130, 16
        %s132 = scalar_lea.vmem [#allocation2], %s131
        // Predicated region
        $region25: #{tpu_custom_call.1} parent=23 // pred_check
          %p133 = pneg %p50
        $region26: #{tpu_custom_call.1} parent=23 // pred_check_branch
          %135 = sbr.rel (%p133) target = $region28
        $region27: #{tpu_custom_call.1} parent=23 // pred_region
          %137 = dma.done %s129, 256
        $region28: #{tpu_custom_call.1} parent=23 // pred_fallthru
          _
        %s138 = sand.u32 %s37, 1
        %s139 = scalar_lea.sflag [#allocation3], %s138
        %s140 = sand.u32 %s37, 1
        %s141 = smul.addr %s140, 16
        %s142 = scalar_lea.vmem [#allocation2], %s141
        %p143 = pneg %p50
        %p144 = pneg %p47
        %p145 = pneg %p78
        %p146 = pneg %p75
        %s147 = smul.u32 2, %s20
        %p148 = scmp.lt.s32.totalorder %s19, 7
        %s149 = scalar_select %p148, %s19, 7
        %p150 = scmp.lt.s32.totalorder %s147, 1
        %s151 = scalar_select %p150, %s147, 1
        %s152 = smul.addr %s149, 2
        %s153 = sadd.s32 %s151, %s152
        %s154 = smul.addr %s153, 8
        %s155 = scalar_lea.vmem %s1, %s154
        %s156 = smul.u32 2, %s20
        %s157 = smul.u32 2, %s20
        %p158 = scmp.lt.s32.totalorder %s19, 7
        %s159 = scalar_select %p158, %s19, 7
        %p160 = scmp.lt.s32.totalorder %s157, 1
        %s161 = scalar_select %p160, %s157, 1
        %s162 = smul.addr %s159, 2
        %s163 = sadd.s32 %s161, %s162
        %s164 = smul.addr %s163, 8
        %s165 = scalar_lea.vmem %s1, %s164
        %s166 = smul.u32 2, %s20
        %v167 = vld [vmem:[%s132] sm:$0xff]
        %v168 = vld [vmem:[%s132 + $0x8] sm:$0x3f]
        %vm169 = vcmask 97280
        %170 = vst.msk [vmem:[%s165] sm:$0xff] %vm169, %v167
        %vm171 = vcmask 95232
        %172 = vst.msk [vmem:[%s165 + $0x8] sm:$0x3f] %vm171, %v168
        %s173 = smul.u32 2, %s20
        %p174 = scmp.lt.s32.totalorder %s19, 7
        %s175 = scalar_select %p174, %s19, 7
        %p176 = scmp.lt.s32.totalorder %s173, 1
        %s177 = scalar_select %p176, %s173, 1
        %s178 = smul.addr %s175, 2
        %s179 = sadd.s32 %s177, %s178
        %s180 = smul.addr %s179, 8
        %s181 = scalar_lea.vmem %s1, %s180
        // Predicated region
        $region29: #{tpu_custom_call.1} parent=23 // pred_check
          %p182 = pneg %p75
        $region30: #{tpu_custom_call.1} parent=23 // pred_check_branch
          %184 = sbr.rel (%p182) target = $region32
        $region31: #{tpu_custom_call.1} parent=23 // pred_region
          %s185 = smul.u32 2, %s20
        $region32: #{tpu_custom_call.1} parent=23 // pred_fallthru
          _
      $region24: #{tpu_custom_call.1} parent=5 // pred_fallthru
        _
      %p186 = scmp.le.s32.totalorder 2, %s10
      // Predicated region
      $region33: #{tpu_custom_call.1} parent=5 // pred_check
        %p187 = pneg %p186
      $region34: #{tpu_custom_call.1} parent=5 // pred_check_branch
        %189 = sbr.rel (%p187) target = $region36
      $region35: #{tpu_custom_call.1} parent=5 // pred_region
        %s190 = ssub.s32 %s10, 2
        // Predicated region
        $region37: #{tpu_custom_call.1} parent=35 // pred_check
          %p191 = pneg %p81
        $region38: #{tpu_custom_call.1} parent=35 // pred_check_branch
          %193 = sbr.rel (%p191) target = $region40
        $region39: #{tpu_custom_call.1} parent=35 // pred_region
          %s194 = smul.u32 2, %s22
          %p195 = scmp.lt.s32.totalorder %s21, 7
          %s196 = scalar_select %p195, %s21, 7
          %p197 = scmp.lt.s32.totalorder %s194, 1
          %s198 = scalar_select %p197, %s194, 1
          %s199 = smul.addr %s196, 2
          %s200 = sadd.s32 %s198, %s199
          %s201 = smul.addr %s200, 8
          %s202 = scalar_lea.vmem %s1, %s201
        $region40: #{tpu_custom_call.1} parent=35 // pred_fallthru
          _
      $region36: #{tpu_custom_call.1} parent=5 // pred_fallthru
        _
    $region6: #{tpu_custom_call.1} parent=1 // loop_footer
      %s14 = sadd.s32 1, %s10
    $region7: #{tpu_custom_call.1} parent=1 // loop_footer_branch
      %9 = sbr.rel target = $region3
    $region8: #{tpu_custom_call.1} parent=1 // loop_exit
      _
    %203 = vsyncpa [#allocation3], 1
    %s204 = scalar_lea.sflag [#allocation3], 1
    %205 = vsyncpa %s204, 1

</llo_original>
